<compile_context>
chip_gen: v7x
topology: tpu7x:2x2x1
jax: 0.10.0
libtpu: 0.0.40
codegen_flags: <defaults>
</compile_context>

<pallas_src>
import jax
import jax.numpy as jnp
from jax import lax
from jax.experimental import pallas as pl
from jax.experimental.pallas import tpu as pltpu

# ---- config (mirrors default_config of the PyTorch module) ----------------
B        = 8        # batch
IN_DIM   = 16       # config['in_dim']
OUT_DIM  = 32       # config['out_dim']
MAX_ITER = 50       # config['max_iter']
TOL      = 1e-6     # config['tol']


def deq_fixed_point_kernel(x_ref, w_ref, u_ref, b_ref, z0_ref, z_out_ref):
    """BaseNet.forward_eval: early-exit fixed-point iteration, fully in-kernel."""
    x   = x_ref[...]                     # (B, IN_DIM)
    w_t = w_ref[...].T                   # (OUT_DIM, OUT_DIM) — transposed ONCE, reused
    u_t = u_ref[...].T                   # (IN_DIM, OUT_DIM)
    b   = b_ref[...]                     # (1, OUT_DIM)

    # x @ U^T + b is constant across iterations -> hoist out of the loop.
    xu = jnp.dot(x, u_t, preferred_element_type=jnp.float32) + b     # (B, OUT_DIM)

    tol_sq = jnp.float32(TOL * TOL)

    def cond(carry):
        _, it, res_sq = carry
        # keep iterating while not converged and under the iteration budget
        return jnp.logical_and(it < MAX_ITER, res_sq >= tol_sq)

    def body(carry):
        z, it, _ = carry
        z_new = jnp.tanh(jnp.dot(z, w_t, preferred_element_type=jnp.float32) + xu)
        diff = z_new - z
        res_sq = jnp.sum(diff * diff)    # squared L2 — no sqrt on the serial chain
        # PyTorch semantics: z <- z_new every iteration; `break` only stops
        # further iterations, which the while-cond reproduces exactly.
        return (z_new, it + jnp.int32(1), res_sq)

    z0 = z0_ref[...]
    z_final, _, _ = lax.while_loop(
        cond, body, (z0, jnp.int32(0), jnp.float32(jnp.inf)))
    z_out_ref[...] = z_final


def base_net_forward_eval(x, w, u, b, z=None):
    """JAX wrapper: BaseNet.forward(x, z) in eval mode (fixed-point iteration)."""
    if z is None:
        z = jnp.zeros((x.shape[0], OUT_DIM), dtype=jnp.float32)  # torch.zeros(x.shape[0], out_dim)
    b2 = b.reshape(1, OUT_DIM)

    # All operands (~8 KB total) are VMEM-resident whole-array blocks;
    # no grid / no pipelining machinery for this microscopic working set.
    vmem_spec = pl.BlockSpec(memory_space=pltpu.MemorySpace.VMEM)

    # TODO(synk): if many independent (x, z0) problems exist, stack them and add
    # a leading "parallel" grid axis so v7x's second TensorCore gets fed.
    return pl.pallas_call(
        deq_fixed_point_kernel,
        out_shape=jax.ShapeDtypeStruct((x.shape[0], OUT_DIM), jnp.float32),
        in_specs=[vmem_spec, vmem_spec, vmem_spec, vmem_spec, vmem_spec],
        out_specs=vmem_spec,
    )(x, w, u, b2, z)


def base_net_forward_eval_ref(x, w, u, b, z=None):
    """Pure-JAX (eager) reference mirroring the PyTorch loop + break exactly."""
    if z is None:
        z = jnp.zeros((x.shape[0], OUT_DIM), dtype=jnp.float32)
    xu = x @ u.T + b.reshape(1, OUT_DIM)
    for _ in range(MAX_ITER):
        z_new = jnp.tanh(z @ w.T + xu)
        res_sq = float(jnp.sum((z_new - z) ** 2))
        if res_sq < TOL * TOL:           # torch.norm(., p=2) < tol
            z = z_new
            break
        z = z_new
    return z


# TODO(synk): forward_train / train_model / train_step / test_model are host-side
# training-loop logic (abstract or optimizer plumbing) and are not kernel work.

if __name__ == "__main__":
    key = jax.random.PRNGKey(0)
    kx, kw, ku, kb = jax.random.split(key, 4)

    x = jax.random.normal(kx, (B, IN_DIM), dtype=jnp.float32)
    # Contractive-ish recurrent weight so the fixed-point iteration converges.
    w = 0.1 * jax.random.normal(kw, (OUT_DIM, OUT_DIM), dtype=jnp.float32)
    u = jax.random.normal(ku, (OUT_DIM, IN_DIM), dtype=jnp.float32)
    b = 0.01 * jax.random.normal(kb, (OUT_DIM,), dtype=jnp.float32)

    z_out = base_net_forward_eval(x, w, u, b)
    z_out = jax.block_until_ready(z_out)

    z_ref = base_net_forward_eval_ref(x, w, u, b)
    assert z_out.shape == (B, OUT_DIM)
    assert jnp.allclose(z_out, z_ref, atol=1e-5), "mismatch vs pure-JAX reference"

    print("KERNEL_OK")
</pallas_src>

<mosaic_0001>
module attributes {stable_mosaic.version = 11 : i64} {
  func.func @deq_fixed_point_kernel(%arg0: memref<8x16xf32, #tpu.memory_space<vmem>>, %arg1: memref<32x32xf32, #tpu.memory_space<vmem>>, %arg2: memref<32x16xf32, #tpu.memory_space<vmem>>, %arg3: memref<1x32xf32, #tpu.memory_space<vmem>>, %arg4: memref<8x32xf32, #tpu.memory_space<vmem>>, %arg5: memref<8x32xf32, #tpu.memory_space<vmem>>) attributes {dimension_semantics = [], scalar_prefetch = 0 : i64, scratch_operands = 0 : i64, tpu.core_type = #tpu.core_type<tc>} {
    %c0 = arith.constant 0 : index
    %c0_0 = arith.constant 0 : index
    %0 = vector.load %arg0[%c0, %c0_0] : memref<8x16xf32, #tpu.memory_space<vmem>>, vector<8x16xf32>
    %c0_1 = arith.constant 0 : index
    %c0_2 = arith.constant 0 : index
    %1 = vector.load %arg1[%c0_1, %c0_2] : memref<32x32xf32, #tpu.memory_space<vmem>>, vector<32x32xf32>
    %2 = tpu.transpose %1, [1, 0] : vector<32x32xf32> -> vector<32x32xf32>
    %c0_3 = arith.constant 0 : index
    %c0_4 = arith.constant 0 : index
    %3 = vector.load %arg2[%c0_3, %c0_4] : memref<32x16xf32, #tpu.memory_space<vmem>>, vector<32x16xf32>
    %4 = tpu.transpose %3, [1, 0] : vector<32x16xf32> -> vector<16x32xf32>
    %c0_5 = arith.constant 0 : index
    %c0_6 = arith.constant 0 : index
    %5 = vector.load %arg3[%c0_5, %c0_6] : memref<1x32xf32, #tpu.memory_space<vmem>>, vector<1x32xf32>
    %cst = arith.constant dense<0.000000e+00> : vector<8x32xf32>
    %6 = tpu.matmul %0, %4, %cst {dimension_numbers = #tpu.dot_dimension_numbers<[1], [0], [0], [1], [0, 0, 1, 1], [], []>} : vector<8x16xf32>, vector<16x32xf32>, vector<8x32xf32> -> vector<8x32xf32>
    %7 = vector.broadcast %5 : vector<1x32xf32> to vector<8x32xf32>
    %8 = arith.addf %6, %7 : vector<8x32xf32>
    %c0_7 = arith.constant 0 : index
    %c0_8 = arith.constant 0 : index
    %9 = vector.load %arg4[%c0_7, %c0_8] : memref<8x32xf32, #tpu.memory_space<vmem>>, vector<8x32xf32>
    %cst_9 = arith.constant 9.99999996E-13 : f32
    %c0_i32 = arith.constant 0 : i32
    %cst_10 = arith.constant 0x7F800000 : f32
    %10:3 = scf.while (%arg6 = %9, %arg7 = %c0_i32, %arg8 = %cst_10) : (vector<8x32xf32>, i32, f32) -> (vector<8x32xf32>, i32, f32) {
      %c50_i32 = arith.constant 50 : i32
      %12 = arith.cmpi slt, %arg7, %c50_i32 : i32
      %13 = arith.cmpf oge, %arg8, %cst_9 : f32
      %14 = arith.andi %12, %13 : i1
      scf.condition(%14) %arg6, %arg7, %arg8 : vector<8x32xf32>, i32, f32
    } do {
    ^bb0(%arg6: vector<8x32xf32>, %arg7: i32, %arg8: f32):
      %cst_13 = arith.constant dense<0.000000e+00> : vector<8x32xf32>
      %12 = tpu.matmul %arg6, %2, %cst_13 {dimension_numbers = #tpu.dot_dimension_numbers<[1], [0], [0], [1], [0, 0, 1, 1], [], []>} : vector<8x32xf32>, vector<32x32xf32>, vector<8x32xf32> -> vector<8x32xf32>
      %13 = arith.addf %12, %8 : vector<8x32xf32>
      %14 = math.tanh %13 : vector<8x32xf32>
      %15 = arith.subf %14, %arg6 : vector<8x32xf32>
      %16 = arith.mulf %15, %15 : vector<8x32xf32>
      %17 = vector.shape_cast %16 : vector<8x32xf32> to vector<1x8x32xf32>
      %cst_14 = arith.constant dense<0.000000e+00> : vector<1xf32>
      %18 = vector.multi_reduction <add>, %17, %cst_14 [1, 2] : vector<1x8x32xf32> to vector<1xf32>
      %19 = vector.shape_cast %18 : vector<1xf32> to vector<1x1x1xf32>
      %20 = vector.extract %19[0, 0, 0] : f32 from vector<1x1x1xf32>
      %c1_i32 = arith.constant 1 : i32
      %21 = arith.addi %arg7, %c1_i32 : i32
      scf.yield %14, %21, %20 : vector<8x32xf32>, i32, f32
    }
    %c0_11 = arith.constant 0 : index
    %c0_12 = arith.constant 0 : index
    %11 = vector.load %arg5[%c0_11, %c0_12] : memref<8x32xf32, #tpu.memory_space<vmem>>, vector<8x32xf32>
    tpu.vector_store %arg5[%c0_11, %c0_12], %10#0 {strides = array<i32>} : memref<8x32xf32, #tpu.memory_space<vmem>>, vector<8x32xf32>,
    return
  }
}

</mosaic_0001>

<llo_original>
// kernel: tpu_custom_call.1
$region0: #{tpu_custom_call.1}
  #allocation0 [shape = 'u32[]', space=smem, size = 0x4, offset = 0x4, fixed_abs, tag = 'smem constant byte address 0x4 - core index']
  #allocation1 [shape = 'u32[144,128]{1,0:T(1,128)}', space=vmem, size = 0x12000, scoped, tag = 'internal scratch']
  %s0 = inlined_call_operand.vmem [shape: f32[8,16], index: 0, kind: input, shape index: {}]
  %s1 = inlined_call_operand.vmem [shape: f32[32,32], index: 1, kind: input, shape index: {}]
  %s2 = inlined_call_operand.vmem [shape: f32[32,16], index: 2, kind: input, shape index: {}]
  %s3 = inlined_call_operand.vmem [shape: f32[1,32], index: 3, kind: input, shape index: {}]
  %s4 = inlined_call_operand.vmem [shape: f32[8,32], index: 4, kind: input, shape index: {}]
  %s5 = inlined_call_operand.hbm [shape: f32[8,32], index: 5, kind: output, shape index: {}]
  %s6 = sld [smem:[#allocation0]]
  $region37: #{tpu_custom_call.1} parent=0
    _
  %s8 = ssub.s32 1, %s6
  %s9 = scalar_select 0, %s8, %s6
  $region1: #{tpu_custom_call.1} parent=0
    #allocation2 [shape = 'u8[4096]{0}', space=vmem, size = 0x1000, scoped, tag = 'output window, operand 0, single buffered']
    #allocation3 [shape = 's32[1]{0}', space=sflag, size = 0x4, scoped, tag = 'scoped memory for tpu_custom_call.1']
    %10 = vsyncpa [#allocation3], 0
    // Predicated region
    $region2: #{tpu_custom_call.1} parent=1 // pred_check
      _
    $region3: #{tpu_custom_call.1} parent=1 // pred_check_branch
      %12 = sbr.rel (0) target = $region5
    $region4: #{tpu_custom_call.1} parent=1 // pred_region
      _
    $region5: #{tpu_custom_call.1} parent=1 // pred_fallthru
      _
    // Predicated region
    $region6: #{tpu_custom_call.1} parent=1 // pred_check
      _
    $region7: #{tpu_custom_call.1} parent=1 // pred_check_branch
      %14 = sbr.rel (0) target = $region9
    $region8: #{tpu_custom_call.1} parent=1 // pred_region
      _
    $region9: #{tpu_custom_call.1} parent=1 // pred_fallthru
      _
    // Predicated region
    $region10: #{tpu_custom_call.1} parent=1 // pred_check
      _
    $region11: #{tpu_custom_call.1} parent=1 // pred_check_branch
      %16 = sbr.rel (0) target = $region13
    $region12: #{tpu_custom_call.1} parent=1 // pred_region
      _
    $region13: #{tpu_custom_call.1} parent=1 // pred_fallthru
      _
    // Predicated region
    $region14: #{tpu_custom_call.1} parent=1 // pred_check
      _
    $region15: #{tpu_custom_call.1} parent=1 // pred_check_branch
      %18 = sbr.rel (0) target = $region17
    $region16: #{tpu_custom_call.1} parent=1 // pred_region
      _
    $region17: #{tpu_custom_call.1} parent=1 // pred_fallthru
      _
    // Predicated region
    $region18: #{tpu_custom_call.1} parent=1 // pred_check
      _
    $region19: #{tpu_custom_call.1} parent=1 // pred_check_branch
      %20 = sbr.rel (0) target = $region21
    $region20: #{tpu_custom_call.1} parent=1 // pred_region
      _
    $region21: #{tpu_custom_call.1} parent=1 // pred_fallthru
      _
    %v21 = vld [vmem:[%s0] sm:$0xff]
    %v22 = vld [vmem:[%s1] sm:$0xff]
    %v23 = vld [vmem:[%s1 + $0x8] sm:$0xff]
    %v24 = vld [vmem:[%s1 + $0x10] sm:$0xff]
    %v25 = vld [vmem:[%s1 + $0x18] sm:$0xff]
    %v26 = vld [vmem:[%s2] sm:$0xff]
    %v27 = vld [vmem:[%s2 + $0x8] sm:$0xff]
    %v28 = vld [vmem:[%s2 + $0x10] sm:$0xff]
    %v29 = vld [vmem:[%s2 + $0x18] sm:$0xff]
    %v30 = vld [vmem:[%s3] sm:$0x1]
    %v32 = vlaneseq
    %v33 = vshrl.u32 %v32, 7
    %v34 = vsub.s32 0, %v33
    %v35 = vrot.slane %v30, %v34
    %vm37 = vcmask 130048
    %v39 = vsel %vm37, %v21, 0
    %v42 = vsel %vm37, %v26, 0
    %v45 = vsel %vm37, %v27, 0
    %v48 = vsel %vm37, %v28, 0
    %v51 = vsel %vm37, %v29, 0
    %53 = vmatprep.subr.mxu0 0.0
    %54 = vmatpush1.xpose.msra.mxu0 %v42
    %55 = vmatprep.subr.mxu0 0.0
    %56 = vmatpush1.xpose.msra.mxu0 %v45
    %57 = vmatprep.subr.mxu0 0.0
    %58 = vmatpush1.xpose.msra.mxu0 %v48
    %59 = vmatprep.subr.mxu0 0.0
    %60 = vmatpush1.xpose.msra.mxu0 %v51
    %61 = vmatprep.subr.mxu0 0.0
    %62 = vmatpush1.xpose.msra.mxu0 0.0
    %63 = vmatprep.subr.mxu0 0.0
    %64 = vmatpush1.xpose.msra.mxu0 0.0
    %65 = vmatprep.subr.mxu0 0.0
    %66 = vmatpush1.xpose.msra.mxu0 0.0
    %67 = vmatprep.subr.mxu0 0.0
    %68 = vmatpush1.xpose.msra.mxu0 0.0
    %69 = vmatprep.subr.mxu0 0.0
    %70 = vmatpush1.xpose.msra.mxu0 0.0
    %71 = vmatprep.subr.mxu0 0.0
    %72 = vmatpush1.xpose.msra.mxu0 0.0
    %73 = vmatprep.subr.mxu0 0.0
    %74 = vmatpush1.xpose.msra.mxu0 0.0
    %75 = vmatprep.subr.mxu0 0.0
    %76 = vmatpush1.xpose.msra.mxu0 0.0
    %77 = vmatprep.subr.mxu0 0.0
    %78 = vmatpush1.xpose.msra.mxu0 0.0
    %79 = vmatprep.subr.mxu0 0.0
    %80 = vmatpush1.xpose.msra.mxu0 0.0
    %81 = vmatprep.subr.mxu0 0.0
    %82 = vmatpush1.xpose.msra.mxu0 0.0
    %83 = vmatprep.subr.mxu0 0.0
    %84 = vmatpush1.xpose.msra.mxu0 0.0
    %85 = vmatprep.subr.mxu0 0.0
    %86 = vmatpush1.xpose.msra.mxu0 0.0
    %87 = vmatprep.subr.mxu0 0.0
    %88 = vmatpush1.xpose.msra.mxu0 0.0
    %89 = vmatprep.subr.mxu0 0.0
    %90 = vmatpush1.xpose.msra.mxu0 0.0
    %91 = vmatprep.subr.mxu0 0.0
    %92 = vmatpush1.xpose.msra.mxu0 0.0
    %93 = vmatprep.subr.mxu0 0.0
    %94 = vmatpush1.xpose.msra.mxu0 0.0
    %95 = vmatprep.subr.mxu0 0.0
    %96 = vmatpush1.xpose.msra.mxu0 0.0
    %97 = vmatprep.subr.mxu0 0.0
    %98 = vmatpush1.xpose.msra.mxu0 0.0
    %99 = vmatprep.subr.mxu0 0.0
    %100 = vmatpush1.xpose.msra.mxu0 0.0
    %101 = vmatprep.subr.mxu0 0.0
    %102 = vmatpush1.xpose.msra.mxu0 0.0
    %103 = vmatprep.subr.mxu0 0.0
    %104 = vmatpush1.xpose.msra.mxu0 0.0
    %105 = vmatprep.subr.mxu0 0.0
    %106 = vmatpush1.xpose.msra.mxu0 0.0
    %107 = vmatprep.subr.mxu0 0.0
    %108 = vmatpush1.xpose.msra.mxu0 0.0
    %109 = vmatprep.subr.mxu0 0.0
    %110 = vmatpush1.xpose.msra.mxu0 0.0
    %111 = vmatprep.subr.mxu0 0.0
    %112 = vmatpush1.xpose.msra.mxu0 0.0
    %113 = vmatprep.subr.mxu0 0.0
    %114 = vmatpush1.xpose.msra.mxu0 0.0
    %115 = vmatprep.subr.mxu0 0.0
    %116 = vmatpush1.xpose.msra.mxu0 0.0
    %117 = vmatprep.mubr.f32.mxu0 0.0
    %118 = vmatmul.mubr.f32.gmra.mrb[0].mxu0 %v39
    %v119 = vpop.f32.mrb[0].mxu0
    %v120 = vadd.f32 %v35, %v119
    %v121 = vpop.f32.mrb[0].mxu0
    %122 = vdwg.mxu0
    %v123 = vld [vmem:[%s4] sm:$0xff]
    // While loop
    $region22: #{tpu_custom_call.1} parent=1 // loop_pre_header
      _
    $region23: #{tpu_custom_call.1} parent=1 // loop_header
      %v125 = vphi %v123, %v220
      %s126 = sphi 0, %s233
      %s127 = sphi inf, %s232
      %p128 = scmp.lt.s32.totalorder %s126, 50
      %p129 = scmp.ge.f32.partialorder %s127, 1e-12
      %p130 = pnand %p128, %p129
      %p131 = pneg %p130
    $region24: #{tpu_custom_call.1} parent=1 // loop_header_branch
      %133 = sbr.rel (%p130) target = $region28
    $region25: #{tpu_custom_call.1} parent=1 // loop_body
      %vm134 = vcmask 261120
      %v136 = vsel %vm134, %v125, 0
      %v139 = vsel %vm134, %v22, 0
      %v142 = vsel %vm134, %v23, 0
      %v145 = vsel %vm134, %v24, 0
      %v148 = vsel %vm134, %v25, 0
      %150 = vmatprep.subr.mxu0 0.0
      %151 = vmatpush1.xpose.msra.mxu0 %v139
      %152 = vmatprep.subr.mxu0 0.0
      %153 = vmatpush1.xpose.msra.mxu0 %v142
      %154 = vmatprep.subr.mxu0 0.0
      %155 = vmatpush1.xpose.msra.mxu0 %v145
      %156 = vmatprep.subr.mxu0 0.0
      %157 = vmatpush1.xpose.msra.mxu0 %v148
      %158 = vmatprep.subr.mxu0 0.0
      %159 = vmatpush1.xpose.msra.mxu0 0.0
      %160 = vmatprep.subr.mxu0 0.0
      %161 = vmatpush1.xpose.msra.mxu0 0.0
      %162 = vmatprep.subr.mxu0 0.0
      %163 = vmatpush1.xpose.msra.mxu0 0.0
      %164 = vmatprep.subr.mxu0 0.0
      %165 = vmatpush1.xpose.msra.mxu0 0.0
      %166 = vmatprep.subr.mxu0 0.0
      %167 = vmatpush1.xpose.msra.mxu0 0.0
      %168 = vmatprep.subr.mxu0 0.0
      %169 = vmatpush1.xpose.msra.mxu0 0.0
      %170 = vmatprep.subr.mxu0 0.0
      %171 = vmatpush1.xpose.msra.mxu0 0.0
      %172 = vmatprep.subr.mxu0 0.0
      %173 = vmatpush1.xpose.msra.mxu0 0.0
      %174 = vmatprep.subr.mxu0 0.0
      %175 = vmatpush1.xpose.msra.mxu0 0.0
      %176 = vmatprep.subr.mxu0 0.0
      %177 = vmatpush1.xpose.msra.mxu0 0.0
      %178 = vmatprep.subr.mxu0 0.0
      %179 = vmatpush1.xpose.msra.mxu0 0.0
      %180 = vmatprep.subr.mxu0 0.0
      %181 = vmatpush1.xpose.msra.mxu0 0.0
      %182 = vmatprep.subr.mxu0 0.0
      %183 = vmatpush1.xpose.msra.mxu0 0.0
      %184 = vmatprep.subr.mxu0 0.0
      %185 = vmatpush1.xpose.msra.mxu0 0.0
      %186 = vmatprep.subr.mxu0 0.0
      %187 = vmatpush1.xpose.msra.mxu0 0.0
      %188 = vmatprep.subr.mxu0 0.0
      %189 = vmatpush1.xpose.msra.mxu0 0.0
      %190 = vmatprep.subr.mxu0 0.0
      %191 = vmatpush1.xpose.msra.mxu0 0.0
      %192 = vmatprep.subr.mxu0 0.0
      %193 = vmatpush1.xpose.msra.mxu0 0.0
      %194 = vmatprep.subr.mxu0 0.0
      %195 = vmatpush1.xpose.msra.mxu0 0.0
      %196 = vmatprep.subr.mxu0 0.0
      %197 = vmatpush1.xpose.msra.mxu0 0.0
      %198 = vmatprep.subr.mxu0 0.0
      %199 = vmatpush1.xpose.msra.mxu0 0.0
      %200 = vmatprep.subr.mxu0 0.0
      %201 = vmatpush1.xpose.msra.mxu0 0.0
      %202 = vmatprep.subr.mxu0 0.0
      %203 = vmatpush1.xpose.msra.mxu0 0.0
      %204 = vmatprep.subr.mxu0 0.0
      %205 = vmatpush1.xpose.msra.mxu0 0.0
      %206 = vmatprep.subr.mxu0 0.0
      %207 = vmatpush1.xpose.msra.mxu0 0.0
      %208 = vmatprep.subr.mxu0 0.0
      %209 = vmatpush1.xpose.msra.mxu0 0.0
      %210 = vmatprep.subr.mxu0 0.0
      %211 = vmatpush1.xpose.msra.mxu0 0.0
      %212 = vmatprep.subr.mxu0 0.0
      %213 = vmatpush1.xpose.msra.mxu0 0.0
      %214 = vmatprep.mubr.f32.mxu0 0.0
      %215 = vmatmul.mubr.f32.gmra.mrb[0].mxu0 %v136
      %v216 = vpop.f32.mrb[0].mxu0
      %v217 = vadd.f32 %v120, %v216
      %v218 = vpop.f32.mrb[0].mxu0
      %219 = vdwg.mxu0
      %v220 = vtanh.pop %v217
      %v221 = vsub.f32 %v220, %v125
      %v222 = vmul.f32 %v221, %v221
      %v223 = vsel %vm134, %v222, 0.0
      %224 = vadd.xlane.f32.xlu0 %v223
      %v225 = vpop.xlane.xlu0 %224
      %v226 = vrot.slane %v225, 4
      %v227 = vadd.f32 %v225, %v226
      %v228 = vrot.slane %v227, 2
      %v229 = vadd.f32 %v227, %v228
      %v230 = vrot.slane %v229, 1
      %v231 = vadd.f32 %v229, %v230
      %s232 = vtos %v231
      %s233 = sadd.s32 %s126, 1
    $region26: #{tpu_custom_call.1} parent=1 // loop_footer
      _
    $region27: #{tpu_custom_call.1} parent=1 // loop_footer_branch
      %124 = sbr.rel target = $region23
    $region28: #{tpu_custom_call.1} parent=1 // loop_exit
      _
    %vm234 = vcmask 261120
    %235 = vst.msk [vmem:[#allocation2] sm:$0xff] %vm234, %v125
    // Predicated region
    $region29: #{tpu_custom_call.1} parent=1 // pred_check
      _
    $region30: #{tpu_custom_call.1} parent=1 // pred_check_branch
      %237 = sbr.rel (0) target = $region32
    $region31: #{tpu_custom_call.1} parent=1 // pred_region
      %s239 = ssub.s32 128, 128
      %240 = vsyncadd [#allocation3], %s239
      %s242 = sshll.u32 [#allocation2], 4
      %s243 = int_to_ptr.vmem [resolvable:$true] %s242
      %245 = dma.vmem_to_hbm [thread:$0]  %s243, 128, %s5, [#allocation3]
    $region32: #{tpu_custom_call.1} parent=1 // pred_fallthru
      _
    // Predicated region
    $region33: #{tpu_custom_call.1} parent=1 // pred_check
      _
    $region34: #{tpu_custom_call.1} parent=1 // pred_check_branch
      %247 = sbr.rel (0) target = $region36
    $region35: #{tpu_custom_call.1} parent=1 // pred_region
      %248 = dma.done [#allocation3], 128
    $region36: #{tpu_custom_call.1} parent=1 // pred_fallthru
      _
    %249 = vsyncpa [#allocation3], 1

</llo_original>
